<compile_context>
chip_gen: v5e
topology: v5e:2x2
jax: 0.10.0
libtpu: 0.0.40
codegen_flags: <defaults>
</compile_context>

<pallas_src>
import jax
import jax.numpy as jnp
from jax.experimental import pallas as pl
from jax.experimental.pallas import tpu as pltpu

LANE = 128
SUBLANE = 8


# ---------------------------------------------------------------------------
# Kernels: each grid block reads a (tr, 128) tile of two inputs and emits an
# (8, 128) partial sum of the elementwise loss term.
# ---------------------------------------------------------------------------
def _mse_partial_kernel(a_ref, b_ref, out_ref):
    d = a_ref[...] - b_ref[...]
    val = d * d
    # (tr, 128) -> (tr//8, 8, 128); sum over leading axis is a tree of VPU adds
    # of whole vregs (no cross-lane XLU work in the hot loop).
    out_ref[...] = jnp.sum(val.reshape(-1, SUBLANE, LANE), axis=0)


def _kld_partial_kernel(mean_ref, var_ref, out_ref):
    m = mean_ref[...]
    v = var_ref[...]
    val = jnp.exp(v) + m * m - 1.0 - v   # exp is the only EUP op per element
    out_ref[...] = jnp.sum(val.reshape(-1, SUBLANE, LANE), axis=0)


# ---------------------------------------------------------------------------
# Wrapper helpers
# ---------------------------------------------------------------------------
def _round_up(x, m):
    return (x + m - 1) // m * m


def _pad_to_slab(x, row_tile):
    """Flatten x, zero-pad to a multiple of (tr * 128), reshape to (rows, 128).

    Returns (slab, tr, num_blocks). tr is always a multiple of 8.
    """
    flat = jnp.ravel(x).astype(jnp.float32)
    n = flat.shape[0]
    rows = -(-n // LANE)                      # ceil-div
    rows8 = _round_up(max(rows, 1), SUBLANE)  # at least one (8,128) tile
    tr = max(SUBLANE, (min(row_tile, rows8) // SUBLANE) * SUBLANE)
    padded_rows = _round_up(rows8, tr)
    pad = padded_rows * LANE - n
    if pad:
        flat = jnp.pad(flat, (0, pad))        # zeros contribute 0 to both terms
    return flat.reshape(padded_rows, LANE), tr, padded_rows // tr


def _partial_sums(kernel, a, b, row_tile):
    assert a.size == b.size, "paired inputs must have the same element count"
    a2, tr, nblk = _pad_to_slab(a, row_tile)
    b2, _, _ = _pad_to_slab(b, row_tile)

    return pl.pallas_call(
        kernel,
        out_shape=jax.ShapeDtypeStruct((nblk * SUBLANE, LANE), jnp.float32),
        grid_spec=pltpu.PrefetchScalarGridSpec(
            num_scalar_prefetch=0,
            grid=(nblk,),
            in_specs=[
                pl.BlockSpec((tr, LANE), lambda i: (i, 0)),
                pl.BlockSpec((tr, LANE), lambda i: (i, 0)),
            ],
            out_specs=pl.BlockSpec((SUBLANE, LANE), lambda i: (i, 0)),
        ),
        compiler_params=pltpu.CompilerParams(
            dimension_semantics=("parallel",)),
    )(a2, b2)


def mse_kld(out_img, inp_img, mean, var, *, kld_weight: float = 0.1,
            row_tile: int = 512):
    """Pallas TPU implementation of MSE_KLD.forward. Returns a scalar f32."""
    out_img = jnp.asarray(out_img, jnp.float32)
    inp_img = jnp.asarray(inp_img, jnp.float32)
    mean = jnp.asarray(mean, jnp.float32)
    var = jnp.asarray(var, jnp.float32)

    mse_partials = _partial_sums(_mse_partial_kernel, out_img, inp_img, row_tile)
    kld_partials = _partial_sums(_kld_partial_kernel, mean, var, row_tile)

    mse = jnp.sum(mse_partials) / float(out_img.size)   # mean over true elems
    kld = 0.5 * jnp.sum(kld_partials)
    return mse + kld_weight * kld


# ---------------------------------------------------------------------------
# Pure-JAX reference + self-test
# ---------------------------------------------------------------------------
def _ref(out_img, inp_img, mean, var, kld_weight=0.1):
    mse = jnp.mean(jnp.square(out_img - inp_img))
    kld = 0.5 * jnp.sum(jnp.exp(var) + jnp.square(mean) - 1.0 - var)
    return mse + kld_weight * kld


if __name__ == "__main__":
    key = jax.random.PRNGKey(0)
    k1, k2, k3, k4 = jax.random.split(key, 4)

    img_shape = (2, 4, 16, 16)   # NCHW images
    lat_shape = (2, 32)          # (batch, latent) mean / log-var

    out_img = jax.random.normal(k1, img_shape, jnp.float32)
    inp_img = jax.random.normal(k2, img_shape, jnp.float32)
    mean = jax.random.normal(k3, lat_shape, jnp.float32)
    var = jax.random.normal(k4, lat_shape, jnp.float32) * 0.5

    out = jax.block_until_ready(mse_kld(out_img, inp_img, mean, var))
    ref = _ref(out_img, inp_img, mean, var)

    if jnp.allclose(out, ref, rtol=1e-5, atol=1e-5):
        print("KERNEL_OK")
    else:
        print("MISMATCH", out, ref)
</pallas_src>

<mosaic_0001>
module attributes {stable_mosaic.version = 11 : i64} {
  func.func @_mse_partial_kernel(%arg0: i32, %arg1: memref<16x128xf32, #tpu.memory_space<vmem>>, %arg2: memref<16x128xf32, #tpu.memory_space<vmem>>, %arg3: memref<8x128xf32, #tpu.memory_space<vmem>>) attributes {dimension_semantics = [#tpu.dimension_semantics<parallel>], iteration_bounds = array<i64: 1>, scalar_prefetch = 0 : i64, scratch_operands = 0 : i64, tpu.core_type = #tpu.core_type<tc>, window_params = [{transform_indices = @transform_0, window_bounds = array<i64: 16, 128>}, {transform_indices = @transform_1, window_bounds = array<i64: 16, 128>}, {transform_indices = @transform_2, window_bounds = array<i64: 8, 128>}]} {
    %c0 = arith.constant 0 : index
    %c0_0 = arith.constant 0 : index
    %0 = vector.load %arg1[%c0, %c0_0] : memref<16x128xf32, #tpu.memory_space<vmem>>, vector<16x128xf32>
    %c0_1 = arith.constant 0 : index
    %c0_2 = arith.constant 0 : index
    %1 = vector.load %arg2[%c0_1, %c0_2] : memref<16x128xf32, #tpu.memory_space<vmem>>, vector<16x128xf32>
    %2 = arith.subf %0, %1 : vector<16x128xf32>
    %3 = arith.mulf %2, %2 : vector<16x128xf32>
    %4 = vector.shape_cast %3 : vector<16x128xf32> to vector<2x8x128xf32>
    %cst = arith.constant dense<0.000000e+00> : vector<8x128xf32>
    %5 = vector.multi_reduction <add>, %4, %cst [0] : vector<2x8x128xf32> to vector<8x128xf32>
    %c0_3 = arith.constant 0 : index
    %c0_4 = arith.constant 0 : index
    %6 = vector.load %arg3[%c0_3, %c0_4] : memref<8x128xf32, #tpu.memory_space<vmem>>, vector<8x128xf32>
    tpu.vector_store %arg3[%c0_3, %c0_4], %5 {strides = array<i32>} : memref<8x128xf32, #tpu.memory_space<vmem>>, vector<8x128xf32>,
    return
  }
  func.func @transform_0(%arg0: i32) -> (i32, i32) {
    %c0_i32 = arith.constant 0 : i32
    %c0_i32_0 = arith.constant 0 : i32
    return %arg0, %c0_i32 : i32, i32
  }
  func.func @transform_1(%arg0: i32) -> (i32, i32) {
    %c0_i32 = arith.constant 0 : i32
    %c0_i32_0 = arith.constant 0 : i32
    return %arg0, %c0_i32 : i32, i32
  }
  func.func @transform_2(%arg0: i32) -> (i32, i32) {
    %c0_i32 = arith.constant 0 : i32
    %c0_i32_0 = arith.constant 0 : i32
    return %arg0, %c0_i32 : i32, i32
  }
}

</mosaic_0001>

<llo_original>
// kernel: tpu_custom_call.1
$region0: #{tpu_custom_call.1}
  #allocation0 [shape = 'u32[]', space=smem, size = 0x4, offset = 0x4, fixed_abs, tag = 'smem constant byte address 0x4 - core index']
  #allocation1 [shape = 'u32[72,128]{1,0:T(1,128)}', space=vmem, size = 0x9000, scoped, tag = 'internal scratch']
  %s0 = inlined_call_operand.hbm [shape: f32[16,128], index: 0, kind: input, shape index: {}]
  %s1 = inlined_call_operand.hbm [shape: f32[16,128], index: 1, kind: input, shape index: {}]
  %s2 = inlined_call_operand.hbm [shape: f32[8,128], index: 2, kind: output, shape index: {}]
  %s3 = sld [smem:[#allocation0]]
  $region26: #{tpu_custom_call.1} parent=0
    _
  %s5 = ssub.s32 1, %s3
  %s6 = scalar_select 0, %s5, %s3
  $region1: #{tpu_custom_call.1} parent=0
    #allocation2 [shape = 'u8[8192]{0}', space=vmem, size = 0x2000, scoped, tag = 'input window, operand 0, single buffered']
    #allocation3 [shape = 's32[1]{0}', space=sflag, size = 0x4, scoped, tag = 'scoped memory for tpu_custom_call.1']
    #allocation4 [shape = 's32[1]{0}', space=sflag, size = 0x4, scoped, tag = 'scoped memory for tpu_custom_call.1']
    #allocation5 [shape = 'u8[8192]{0}', space=vmem, size = 0x2000, scoped, tag = 'input window, operand 1, single buffered']
    #allocation6 [shape = 's32[1]{0}', space=sflag, size = 0x4, scoped, tag = 'scoped memory for tpu_custom_call.1']
    #allocation7 [shape = 'u8[4096]{0}', space=vmem, size = 0x1000, scoped, tag = 'output window, operand 0, single buffered']
    %7 = vsyncpa [#allocation3], 0
    %8 = vsyncpa [#allocation6], 0
    %9 = vsyncpa [#allocation4], 0
    // Predicated region
    $region2: #{tpu_custom_call.1} parent=1 // pred_check
      _
    $region3: #{tpu_custom_call.1} parent=1 // pred_check_branch
      %11 = sbr.rel (0) target = $region5
    $region4: #{tpu_custom_call.1} parent=1 // pred_region
      %13 = vsyncadd [#allocation3], 0
      %s14 = sshll.u32 %s0, 4
      %s15 = int_to_ptr.hbm [resolvable:$true] %s14
      %s16 = sshll.u32 [#allocation2], 4
      %s17 = int_to_ptr.vmem [resolvable:$true] %s16
      %22 = dma.hbm_to_vmem [thread:$0]  %s15, 256, %s17, [#allocation3], 128, 128, 8
    $region5: #{tpu_custom_call.1} parent=1 // pred_fallthru
      _
    // Predicated region
    $region6: #{tpu_custom_call.1} parent=1 // pred_check
      _
    $region7: #{tpu_custom_call.1} parent=1 // pred_check_branch
      %24 = sbr.rel (0) target = $region9
    $region8: #{tpu_custom_call.1} parent=1 // pred_region
      %26 = vsyncadd [#allocation6], 0
      %s27 = sshll.u32 %s1, 4
      %s28 = int_to_ptr.hbm [resolvable:$true] %s27
      %s29 = sshll.u32 [#allocation5], 4
      %s30 = int_to_ptr.vmem [resolvable:$true] %s29
      %35 = dma.hbm_to_vmem [thread:$0]  %s28, 256, %s30, [#allocation6], 128, 128, 8
    $region9: #{tpu_custom_call.1} parent=1 // pred_fallthru
      _
    // Predicated region
    $region10: #{tpu_custom_call.1} parent=1 // pred_check
      _
    $region11: #{tpu_custom_call.1} parent=1 // pred_check_branch
      %37 = sbr.rel (0) target = $region13
    $region12: #{tpu_custom_call.1} parent=1 // pred_region
      %39 = dma.done [#allocation3], 256
    $region13: #{tpu_custom_call.1} parent=1 // pred_fallthru
      _
    // Predicated region
    $region14: #{tpu_custom_call.1} parent=1 // pred_check
      _
    $region15: #{tpu_custom_call.1} parent=1 // pred_check_branch
      %41 = sbr.rel (0) target = $region17
    $region16: #{tpu_custom_call.1} parent=1 // pred_region
      %43 = dma.done [#allocation6], 256
    $region17: #{tpu_custom_call.1} parent=1 // pred_fallthru
      _
    %v44 = vld [vmem:[#allocation2] sm:$0xff]
    %v45 = vld [vmem:[#allocation2 + $0x8] sm:$0xff]
    %v46 = vld [vmem:[#allocation5] sm:$0xff]
    %v47 = vld [vmem:[#allocation5 + $0x8] sm:$0xff]
    %v48 = vsub.f32 %v44, %v46
    %v49 = vsub.f32 %v45, %v47
    %v50 = vmul.f32 %v48, %v48
    %v51 = vmul.f32 %v49, %v49
    %v52 = vadd.f32 %v50, %v51
    %53 = vst [vmem:[#allocation7] sm:$0xff] %v52
    // Predicated region
    $region18: #{tpu_custom_call.1} parent=1 // pred_check
      _
    $region19: #{tpu_custom_call.1} parent=1 // pred_check_branch
      %55 = sbr.rel (0) target = $region21
    $region20: #{tpu_custom_call.1} parent=1 // pred_region
      %57 = vsyncadd [#allocation4], 0
      %s59 = sshll.u32 [#allocation7], 4
      %s60 = int_to_ptr.vmem [resolvable:$true] %s59
      %s61 = sshll.u32 %s2, 4
      %s62 = int_to_ptr.hbm [resolvable:$true] %s61
      %64 = dma.vmem_to_hbm [thread:$0]  %s60, 128, %s62, [#allocation4]
    $region21: #{tpu_custom_call.1} parent=1 // pred_fallthru
      _
    // Predicated region
    $region22: #{tpu_custom_call.1} parent=1 // pred_check
      _
    $region23: #{tpu_custom_call.1} parent=1 // pred_check_branch
      %66 = sbr.rel (0) target = $region25
    $region24: #{tpu_custom_call.1} parent=1 // pred_region
      %68 = dma.done [#allocation4], 128
    $region25: #{tpu_custom_call.1} parent=1 // pred_fallthru
      _
    %69 = vsyncpa [#allocation3], 1
    %70 = vsyncpa [#allocation6], 1
    %71 = vsyncpa [#allocation4], 1

</llo_original>
